<compile_context>
chip_gen: v6e
topology: v6e:2x2x1
jax: 0.10.0
libtpu: 0.0.40
codegen_flags: <defaults>
</compile_context>

<pallas_src>
import functools

import jax
import jax.numpy as jnp
from jax import lax
from jax.experimental import pallas as pl
from jax.experimental.pallas import tpu as pltpu


_DEFAULT_COMPUTE_DTYPE = jnp.bfloat16

# ~70% of v7x's 64 MiB physical VMEM (well under v5e/v6e's 128 MiB), and a
# per-step tile-footprint budget that leaves headroom for Mosaic scratch.
_VMEM_LIMIT_BYTES = 44 * 1024 * 1024
_VMEM_TILE_BUDGET = 32 * 1024 * 1024

_LANE = 128
_SUBLANE = 8


# ----------------------------------------------------------------------------
# VMEM footprint / tile-size helpers
# ----------------------------------------------------------------------------
def _round_up(x, n):
    return ((x + n - 1) // n) * n


def _padded_bytes(shape, itemsize):
    """Lane/sublane-padded VMEM bytes of a tile (minor->128, second-minor->8)."""
    if len(shape) == 1:
        return _round_up(shape[0], _LANE) * itemsize
    lead = 1
    for d in shape[:-2]:
        lead *= d
    return lead * _round_up(shape[-2], _SUBLANE) * _round_up(shape[-1], _LANE) * itemsize


def _compose_footprint_bytes(B, D_in, D_out, tm, cbytes):
    return (
        2 * _padded_bytes((B, D_in), cbytes)             # x (double-buffered)
        + 2 * _padded_bytes((tm, D_out, D_in), cbytes)   # We chunk (double-buffered)
        + 2 * _padded_bytes((tm, D_in, D_out), cbytes)   # Wd chunk (double-buffered)
        + 2 * _padded_bytes((B, tm * D_in), 4)           # out block, f32 (double-buffered)
        + _padded_bytes((tm, D_in, D_in), 4)             # live composed W (f32 SSA value)
        + _padded_bytes((B, tm * D_in), 4)               # live y before the store
    )


def _packed_footprint_bytes(B, D_in, tn, cbytes):
    return (
        2 * _padded_bytes((B, D_in), cbytes)             # x (double-buffered)
        + 2 * _padded_bytes((D_in, tn), cbytes)          # packed-W chunk (double-buffered)
        + 2 * _padded_bytes((B, tn), 4)                  # out block, f32 (double-buffered)
        + _padded_bytes((B, tn), 4)                      # live y before the store
    )


def _pick_tm(M, B, D_in, D_out, cbytes, budget=_VMEM_TILE_BUDGET):
    """Chunk size along M for the fused (compose-in-kernel) path."""
    # Legal: output block lane width tm*D_in must be a multiple of 128 or full.
    cands = [d for d in range(1, M + 1)
             if M % d == 0 and (d == M or (d * D_in) % 128 == 0)]
    cands.sort(reverse=True)
    chosen = cands[-1]
    for tm in cands:
        if _compose_footprint_bytes(B, D_in, D_out, tm, cbytes) <= budget:
            chosen = tm
            break
    # v7x has 2 TensorCores: keep >= 2 (even) "parallel" grid steps when each
    # half-chunk still streams a non-trivial weight volume; otherwise one big
    # step wins (minimizes the ~0.35 us/step overhead on v5e/v6e's single TC).
    if chosen == M and M % 2 == 0:
        half = M // 2
        half_weight_bytes = half * (D_in * D_out * 2) * cbytes
        if (half * D_in) % 128 == 0 and half_weight_bytes >= (512 << 10):
            chosen = half
    return chosen


def _pick_tn(N, B, D_in, cbytes, budget=_VMEM_TILE_BUDGET):
    """Lane-chunk width (multiple of D_in) for the precomposed/packed path."""
    cands = [k * D_in for k in range(1, N // D_in + 1)
             if N % (k * D_in) == 0 and ((k * D_in) % 128 == 0 or k * D_in == N)]
    cands.sort(reverse=True)
    fitting = [t for t in cands if _packed_footprint_bytes(B, D_in, t, cbytes) <= budget]
    pool = fitting if fitting else cands[-1:]
    # Prefer a 256-lane multiple (v6e/v7x MXU result tile); 128 suffices on v5e.
    for t in pool:
        if t % 256 == 0:
            return t
    return pool[0]


# ----------------------------------------------------------------------------
# Kernels
# ----------------------------------------------------------------------------
def _packed_project_kernel(x_ref, w_ref, o_ref):
    # x_ref: (B, D_in)  compute dtype
    # w_ref: (D_in, tn) pre-composed, pre-packed weights (NN form: contraction
    #                   is the natural sublane dim of the rhs -> no XLU transpose)
    # o_ref: (B, tn)    lane-dense output slab
    y = lax.dot_general(
        x_ref[...], w_ref[...],
        dimension_numbers=(((1,), (0,)), ((), ())),
        preferred_element_type=jnp.float32,
    )
    o_ref[...] = y.astype(o_ref.dtype)


def _compose_project_kernel(x_ref, we_ref, wd_ref, o_ref, *, tm, d_in):
    # Fused path (used only when B is large enough that composing in-kernel is
    # FLOP-cheaper than the two-step form).
    # x_ref : (B, D_in)           input block, resident across the grid
    # we_ref: (tm, D_out, D_in)   encoder weights for this chunk of m
    # wd_ref: (tm, D_in, D_out)   decoder weights for this chunk of m
    # o_ref : (B, tm * D_in)      lane-dense output slab for this chunk
    x = x_ref[...]
    we = we_ref[...]
    wd = wd_ref[...]

    # W[m, i, j] = sum_o Wd[m, i, o] * We[m, o, j]  (batched MXU matmul, f32 acc)
    w = lax.dot_general(
        wd, we,
        dimension_numbers=(((2,), (1,)), ((0,), (0,))),
        preferred_element_type=jnp.float32,
    )
    w = w.astype(x.dtype)                       # back to compute dtype for the MXU

    # Fold m into the matmul N dimension (leading-dim collapse, no data move).
    w2 = w.reshape(tm * d_in, d_in)             # (tm*D_in, D_in)

    # y[b, m*D_in + i] = sum_j x[b, j] * W[m, i, j].
    # NT form (rhs contracts its minor dim) -- acceptable here because this
    # path is only chosen for large B, where the per-step relayout amortizes;
    # for D_in >= 128 prefer the precomposed/packed path (pure NN).
    y = lax.dot_general(
        x, w2,
        dimension_numbers=(((1,), (1,)), ((), ())),
        preferred_element_type=jnp.float32,
    )                                           # (B, tm*D_in), lane-dense
    o_ref[...] = y.astype(o_ref.dtype)


# ----------------------------------------------------------------------------
# Wrappers
# ----------------------------------------------------------------------------
def precompose_weights(we, wd, compute_dtype=_DEFAULT_COMPUTE_DTYPE):
    """One-time (static-weights / inference) precompute of the per-m projection
    matrices, pre-packed as packed[j, m*D_in + i] = (Wd_m @ We_m)[i, j] so the
    per-call kernel is a single NN matmul with a lane-dense output."""
    M, D_out, D_in = we.shape
    assert wd.shape == (M, D_in, D_out), wd.shape
    wef = we.astype(compute_dtype).astype(jnp.float32)
    wdf = wd.astype(compute_dtype).astype(jnp.float32)
    w = jnp.einsum("mio,moj->jmi", wdf, wef)        # (D_in_j, M, D_in_i), f32
    return w.reshape(D_in, M * D_in).astype(compute_dtype)


def _projection_packed(x, w_packed, compute_dtype):
    B, D_in = x.shape
    dj, N = w_packed.shape
    assert dj == D_in and N % D_in == 0, (w_packed.shape, x.shape)
    M = N // D_in
    out_dtype = x.dtype
    cbytes = jnp.dtype(compute_dtype).itemsize

    tn = _pick_tn(N, B, D_in, cbytes)
    n_steps = N // tn

    out_flat = pl.pallas_call(
        _packed_project_kernel,
        out_shape=jax.ShapeDtypeStruct((B, N), out_dtype),
        grid_spec=pltpu.PrefetchScalarGridSpec(
            num_scalar_prefetch=0,
            grid=(n_steps,),
            in_specs=[
                pl.BlockSpec((B, D_in), lambda c: (0, 0)),   # x (resident)
                pl.BlockSpec((D_in, tn), lambda c: (0, c)),  # packed-W chunk
            ],
            out_specs=pl.BlockSpec((B, tn), lambda c: (0, c)),
        ),
        compiler_params=pltpu.CompilerParams(
            dimension_semantics=("parallel",),
            vmem_limit_bytes=_VMEM_LIMIT_BYTES,
        ),
    )(x.astype(compute_dtype), w_packed.astype(compute_dtype))

    # (B, M*D_in) -> (B, M, D_in): contiguous reshape, no transpose.
    return out_flat.reshape(B, M, D_in)


def _projection_fused(x, we, wd, compute_dtype):
    B, D_in = x.shape
    M, D_out, _ = we.shape
    assert we.shape == (M, D_out, D_in), we.shape
    assert wd.shape == (M, D_in, D_out), wd.shape
    out_dtype = x.dtype
    cbytes = jnp.dtype(compute_dtype).itemsize

    tm = _pick_tm(M, B, D_in, D_out, cbytes)
    assert M % tm == 0 and (tm == M or (tm * D_in) % 128 == 0)

    kernel = functools.partial(_compose_project_kernel, tm=tm, d_in=D_in)

    out_flat = pl.pallas_call(
        kernel,
        out_shape=jax.ShapeDtypeStruct((B, M * D_in), out_dtype),
        grid_spec=pltpu.PrefetchScalarGridSpec(
            num_scalar_prefetch=0,
            grid=(M // tm,),
            in_specs=[
                pl.BlockSpec((B, D_in), lambda mc: (0, 0)),              # x (resident)
                pl.BlockSpec((tm, D_out, D_in), lambda mc: (mc, 0, 0)),  # We chunk
                pl.BlockSpec((tm, D_in, D_out), lambda mc: (mc, 0, 0)),  # Wd chunk
            ],
            out_specs=pl.BlockSpec((B, tm * D_in), lambda mc: (0, mc)),
        ),
        compiler_params=pltpu.CompilerParams(
            dimension_semantics=("parallel",),  # lets v7x's 2 TCs split M chunks
            vmem_limit_bytes=_VMEM_LIMIT_BYTES,
        ),
    )(x.astype(compute_dtype), we.astype(compute_dtype), wd.astype(compute_dtype))

    return out_flat.reshape(B, M, D_in)


def _compose_in_kernel_is_cheaper(B, D_in, D_out):
    # per-call MXU mults: fused-compose = M*(D_in*D_out + B*D_in)*D_in
    #                     two-step      = M*(2*B*D_out)*D_in
    return D_in * D_out + B * D_in < 2 * B * D_out


def projection_forward(x, we=None, wd=None, *, w_packed=None, mode="auto",
                       compute_dtype=_DEFAULT_COMPUTE_DTYPE):
    """Forward of Projection. x: (B, D_in); we: (M, D_out, D_in);
    wd: (M, D_in, D_out).  Returns (B, M, D_in), matching
    torch.stack([d(e(x)) for e, d in zip(encoders, decoders)], dim=1).

    If the weights are static across calls (inference), call
    `precompose_weights(we, wd)` once and pass `w_packed=` to skip the
    per-call composition entirely.
    """
    if w_packed is not None:
        return _projection_packed(x, w_packed, compute_dtype)

    assert we is not None and wd is not None
    B, D_in = x.shape
    M, D_out, _ = we.shape

    if mode == "auto":
        mode = "fused" if _compose_in_kernel_is_cheaper(B, D_in, D_out) else "precompose"

    if mode == "precompose":
        # Hoist the composition out of the per-call kernel (plain JAX / XLA op;
        # fuses under jit and is amortized when w_packed is cached by the caller).
        return _projection_packed(x, precompose_weights(we, wd, compute_dtype),
                                  compute_dtype)
    elif mode == "fused":
        return _projection_fused(x, we, wd, compute_dtype)
    else:
        raise ValueError(f"unknown mode: {mode}")


def projection_reference(x, we, wd, compute_dtype=None):
    # Pure-JAX reference of the same math (two-step encode/decode per m).
    if compute_dtype is not None:
        x = x.astype(compute_dtype).astype(jnp.float32)
        we = we.astype(compute_dtype).astype(jnp.float32)
        wd = wd.astype(compute_dtype).astype(jnp.float32)
    h = jnp.einsum("bi,moi->bmo", x, we)     # encode: x @ We_m^T
    y = jnp.einsum("bmo,mio->bmi", h, wd)    # decode: h @ Wd_m^T
    return y                                 # (B, M, D_in)


if __name__ == "__main__":
    # Small shapes consistent with the module: M pairs of Linear(D_in, D_out)
    # / Linear(D_out, D_in), input x of shape (B, D_in).
    M, D_in, D_out, B = 16, 32, 16, 8

    key = jax.random.PRNGKey(0)
    kx, ke, kd = jax.random.split(key, 3)

    x = jax.random.normal(kx, (B, D_in), dtype=jnp.float32)
    # nn.Linear(D_in, D_out).weight has shape (D_out, D_in)
    we = jax.random.normal(ke, (M, D_out, D_in), dtype=jnp.float32) * (1.0 / jnp.sqrt(D_in))
    # nn.Linear(D_out, D_in).weight has shape (D_in, D_out)
    wd = jax.random.normal(kd, (M, D_in, D_out), dtype=jnp.float32) * (1.0 / jnp.sqrt(D_out))

    # Reference in f32 on bf16-rounded inputs (the kernels use bf16 MXU inputs
    # with f32 accumulation; composition order + bf16 W rounding differ).
    ref = projection_reference(x, we, wd, compute_dtype=_DEFAULT_COMPUTE_DTYPE)

    # 1) Auto path: at B < D_in this hoists the composition out of the kernel
    #    and runs the single packed NN matmul kernel.
    out_auto = jax.block_until_ready(projection_forward(x, we, wd))

    # 2) Static-weights / inference usage: precompose once, reuse per call.
    w_packed = precompose_weights(we, wd)
    out_cached = jax.block_until_ready(projection_forward(x, w_packed=w_packed))

    # 3) Fused compose-in-kernel path (exercised explicitly for validation).
    out_fused = jax.block_until_ready(projection_forward(x, we, wd, mode="fused"))

    for name, out in (("auto", out_auto), ("cached", out_cached), ("fused", out_fused)):
        assert out.shape == (B, M, D_in), (name, out.shape)
        err = float(jnp.max(jnp.abs(out.astype(jnp.float32) - ref)))
        assert jnp.allclose(out.astype(jnp.float32), ref, atol=5e-2, rtol=5e-2), (
            "%s path mismatch vs reference, max abs err = %e" % (name, err))

    print("KERNEL_OK")
</pallas_src>

<mosaic_0001>
module attributes {stable_mosaic.version = 11 : i64} {
  func.func @_packed_project_kernel(%arg0: i32, %arg1: memref<8x32xbf16, #tpu.memory_space<vmem>>, %arg2: memref<32x512xbf16, #tpu.memory_space<vmem>>, %arg3: memref<8x512xf32, #tpu.memory_space<vmem>>) attributes {dimension_semantics = [#tpu.dimension_semantics<parallel>], iteration_bounds = array<i64: 1>, scalar_prefetch = 0 : i64, scratch_operands = 0 : i64, tpu.core_type = #tpu.core_type<tc>, window_params = [{pipeline_mode = #tpu.pipeline_mode<synchronous>, transform_indices = @transform_0, window_bounds = array<i64: 8, 32>}, {transform_indices = @transform_1, window_bounds = array<i64: 32, 512>}, {transform_indices = @transform_2, window_bounds = array<i64: 8, 512>}]} {
    %c0 = arith.constant 0 : index
    %c0_0 = arith.constant 0 : index
    %0 = vector.load %arg1[%c0, %c0_0] : memref<8x32xbf16, #tpu.memory_space<vmem>>, vector<8x32xbf16>
    %c0_1 = arith.constant 0 : index
    %c0_2 = arith.constant 0 : index
    %1 = vector.load %arg2[%c0_1, %c0_2] : memref<32x512xbf16, #tpu.memory_space<vmem>>, vector<32x512xbf16>
    %cst = arith.constant dense<0.000000e+00> : vector<8x512xf32>
    %2 = tpu.matmul %0, %1, %cst {dimension_numbers = #tpu.dot_dimension_numbers<[1], [0], [0], [1], [0, 0, 1, 1], [], []>} : vector<8x32xbf16>, vector<32x512xbf16>, vector<8x512xf32> -> vector<8x512xf32>
    %c0_3 = arith.constant 0 : index
    %c0_4 = arith.constant 0 : index
    %3 = vector.load %arg3[%c0_3, %c0_4] : memref<8x512xf32, #tpu.memory_space<vmem>>, vector<8x512xf32>
    tpu.vector_store %arg3[%c0_3, %c0_4], %2 {strides = array<i32>} : memref<8x512xf32, #tpu.memory_space<vmem>>, vector<8x512xf32>,
    return
  }
  func.func @transform_0(%arg0: i32) -> (i32, i32) {
    %c0_i32 = arith.constant 0 : i32
    %c0_i32_0 = arith.constant 0 : i32
    %c0_i32_1 = arith.constant 0 : i32
    return %c0_i32, %c0_i32_0 : i32, i32
  }
  func.func @transform_1(%arg0: i32) -> (i32, i32) {
    %c0_i32 = arith.constant 0 : i32
    %c0_i32_0 = arith.constant 0 : i32
    return %c0_i32, %arg0 : i32, i32
  }
  func.func @transform_2(%arg0: i32) -> (i32, i32) {
    %c0_i32 = arith.constant 0 : i32
    %c0_i32_0 = arith.constant 0 : i32
    return %c0_i32, %arg0 : i32, i32
  }
}

</mosaic_0001>

<llo_original>
// kernel: tpu_custom_call.1
$region0: #{tpu_custom_call.1}
  #allocation0 [shape = 'u32[]', space=smem, size = 0x4, offset = 0x4, fixed_abs, tag = 'smem constant byte address 0x4 - core index']
  #allocation1 [shape = 'u32[144,128]{1,0:T(1,128)}', space=vmem, size = 0x12000, scoped, tag = 'internal scratch']
  %s0 = inlined_call_operand.hbm [shape: bf16[8,32], index: 0, kind: input, shape index: {}]
  %s1 = inlined_call_operand.hbm [shape: bf16[32,512], index: 1, kind: input, shape index: {}]
  %s2 = inlined_call_operand.hbm [shape: f32[8,512], index: 2, kind: output, shape index: {}]
  %s3 = sld [smem:[#allocation0]]
  $region26: #{tpu_custom_call.1} parent=0
    _
  %s5 = ssub.s32 1, %s3
  %s6 = scalar_select 0, %s5, %s3
  $region1: #{tpu_custom_call.1} parent=0
    #allocation2 [shape = 'u8[2048]{0}', space=vmem, size = 0x800, scoped, tag = 'input window, operand 0, single buffered']
    #allocation3 [shape = 's32[1]{0}', space=sflag, size = 0x4, scoped, tag = 'scoped memory for tpu_custom_call.1']
    #allocation4 [shape = 's32[1]{0}', space=sflag, size = 0x4, scoped, tag = 'scoped memory for tpu_custom_call.1']
    #allocation5 [shape = 'u8[32768]{0}', space=vmem, size = 0x8000, scoped, tag = 'input window, operand 1, single buffered']
    #allocation6 [shape = 's32[1]{0}', space=sflag, size = 0x4, scoped, tag = 'scoped memory for tpu_custom_call.1']
    #allocation7 [shape = 'u8[16384]{0}', space=vmem, size = 0x4000, scoped, tag = 'output window, operand 0, single buffered']
    %7 = vsyncpa [#allocation3], 0
    %8 = vsyncpa [#allocation6], 0
    %9 = vsyncpa [#allocation4], 0
    // Predicated region
    $region2: #{tpu_custom_call.1} parent=1 // pred_check
      _
    $region3: #{tpu_custom_call.1} parent=1 // pred_check_branch
      %11 = sbr.rel (0) target = $region5
    $region4: #{tpu_custom_call.1} parent=1 // pred_region
      %s13 = ssub.s32 64, 64
      %14 = vsyncadd [#allocation3], %s13
      %s16 = sshll.u32 [#allocation2], 4
      %s17 = int_to_ptr.vmem [resolvable:$true] %s16
      %19 = dma.hbm_to_vmem [thread:$0]  %s0, 64, %s17, [#allocation3]
    $region5: #{tpu_custom_call.1} parent=1 // pred_fallthru
      _
    // Predicated region
    $region6: #{tpu_custom_call.1} parent=1 // pred_check
      _
    $region7: #{tpu_custom_call.1} parent=1 // pred_check_branch
      %21 = sbr.rel (0) target = $region9
    $region8: #{tpu_custom_call.1} parent=1 // pred_region
      %s23 = ssub.s32 1024, 1024
      %24 = vsyncadd [#allocation6], %s23
      %s25 = sshll.u32 [#allocation5], 4
      %s26 = int_to_ptr.vmem [resolvable:$true] %s25
      %31 = dma.hbm_to_vmem [thread:$0]  %s1, 1024, %s26, [#allocation6], 256, 256, 16
    $region9: #{tpu_custom_call.1} parent=1 // pred_fallthru
      _
    // Predicated region
    $region10: #{tpu_custom_call.1} parent=1 // pred_check
      _
    $region11: #{tpu_custom_call.1} parent=1 // pred_check_branch
      %33 = sbr.rel (0) target = $region13
    $region12: #{tpu_custom_call.1} parent=1 // pred_region
      %34 = dma.done [#allocation3], 64
    $region13: #{tpu_custom_call.1} parent=1 // pred_fallthru
      _
    // Predicated region
    $region14: #{tpu_custom_call.1} parent=1 // pred_check
      _
    $region15: #{tpu_custom_call.1} parent=1 // pred_check_branch
      %36 = sbr.rel (0) target = $region17
    $region16: #{tpu_custom_call.1} parent=1 // pred_region
      %37 = dma.done [#allocation6], 1024
    $region17: #{tpu_custom_call.1} parent=1 // pred_fallthru
      _
    %v39 = vld [vmem:[#allocation2] sm:$0xf]
    %v40 = vld [vmem:[#allocation5] sm:$0xff]
    %v41 = vld [vmem:[#allocation5 + $0x8] sm:$0xff]
    %v42 = vld [vmem:[#allocation5 + $0x10] sm:$0xff]
    %v43 = vld [vmem:[#allocation5 + $0x18] sm:$0xff]
    %v44 = vld [vmem:[#allocation5 + $0x20] sm:$0xff]
    %v45 = vld [vmem:[#allocation5 + $0x28] sm:$0xff]
    %v46 = vld [vmem:[#allocation5 + $0x30] sm:$0xff]
    %v47 = vld [vmem:[#allocation5 + $0x38] sm:$0xff]
    %v56 = vunpack.c.l.b16 %v40
    %v57 = vunpack.c.h.b16 %v40
    %v58 = vunpack.c.l.b16 %v41
    %v59 = vunpack.c.h.b16 %v41
    %v60 = vunpack.c.l.b16 %v42
    %v61 = vunpack.c.h.b16 %v42
    %v62 = vunpack.c.l.b16 %v43
    %v63 = vunpack.c.h.b16 %v43
    %v64 = vunpack.c.l.b16 %v44
    %v65 = vunpack.c.h.b16 %v44
    %v66 = vunpack.c.l.b16 %v45
    %v67 = vunpack.c.h.b16 %v45
    %v68 = vunpack.c.l.b16 %v46
    %v69 = vunpack.c.h.b16 %v46
    %v70 = vunpack.c.l.b16 %v47
    %v71 = vunpack.c.h.b16 %v47
    %v72 = vpack.c.b16 %v60, %v56
    %v73 = vpack.c.b16 %v61, %v57
    %v74 = vpack.c.b16 %v62, %v58
    %v75 = vpack.c.b16 %v63, %v59
    %v76 = vpack.c.b16 %v68, %v64
    %v77 = vpack.c.b16 %v69, %v65
    %v78 = vpack.c.b16 %v70, %v66
    %v79 = vpack.c.b16 %v71, %v67
    %vm88 = vcmask 261120
    %v90 = vsel %vm88, %v39, 0
    %92 = vmatprep.subr.bf16.mxu0 0
    %93 = vmatpush1.bf16.msra.mxu0 0
    %94 = vmatprep.subr.bf16.mxu0 0
    %95 = vmatpush1.bf16.msra.mxu0 0
    %96 = vmatprep.subr.bf16.mxu0 0
    %97 = vmatpush1.bf16.msra.mxu0 0
    %98 = vmatprep.subr.bf16.mxu0 0
    %99 = vmatpush1.bf16.msra.mxu0 0
    %100 = vmatprep.subr.bf16.mxu0 0
    %101 = vmatpush1.bf16.msra.mxu0 0
    %102 = vmatprep.subr.bf16.mxu0 0
    %103 = vmatpush1.bf16.msra.mxu0 0
    %104 = vmatprep.subr.bf16.mxu0 %v77
    %105 = vmatpush1.bf16.msra.mxu0 %v76
    %106 = vmatprep.subr.bf16.mxu0 %v73
    %107 = vmatpush1.bf16.msra.mxu0 %v72
    %108 = vmatprep.subr.bf16.mxu0 0
    %109 = vmatpush2.bf16.msra.mxu0 0
    %110 = vmatprep.subr.bf16.mxu0 0
    %111 = vmatpush2.bf16.msra.mxu0 0
    %112 = vmatprep.subr.bf16.mxu0 0
    %113 = vmatpush2.bf16.msra.mxu0 0
    %114 = vmatprep.subr.bf16.mxu0 0
    %115 = vmatpush2.bf16.msra.mxu0 0
    %116 = vmatprep.subr.bf16.mxu0 0
    %117 = vmatpush2.bf16.msra.mxu0 0
    %118 = vmatprep.subr.bf16.mxu0 0
    %119 = vmatpush2.bf16.msra.mxu0 0
    %120 = vmatprep.subr.bf16.mxu0 0
    %121 = vmatpush2.bf16.msra.mxu0 0
    %122 = vmatprep.subr.bf16.mxu0 0
    %123 = vmatpush2.bf16.msra.mxu0 0
    %124 = vmatprep.mubr.bf16.mxu0 0
    %125 = vmatmul.mubr.bf16.gmra.mxu0 %v90
    %v126 = vpop.f32.mrf.mxu0
    %v127 = vadd.f32 0.0, %v126
    %v128 = vpop.f32.mrf.mxu0
    %v129 = vadd.f32 0.0, %v128
    %v130 = vpop.f32.mrf.mxu0
    %v131 = vpop.f32.mrf.mxu0
    %132 = vdwg.mxu0
    %133 = vmatprep.subr.bf16.mxu0 0
    %134 = vmatpush1.bf16.msra.mxu0 0
    %135 = vmatprep.subr.bf16.mxu0 0
    %136 = vmatpush1.bf16.msra.mxu0 0
    %137 = vmatprep.subr.bf16.mxu0 0
    %138 = vmatpush1.bf16.msra.mxu0 0
    %139 = vmatprep.subr.bf16.mxu0 0
    %140 = vmatpush1.bf16.msra.mxu0 0
    %141 = vmatprep.subr.bf16.mxu0 0
    %142 = vmatpush1.bf16.msra.mxu0 0
    %143 = vmatprep.subr.bf16.mxu0 0
    %144 = vmatpush1.bf16.msra.mxu0 0
    %145 = vmatprep.subr.bf16.mxu0 %v79
    %146 = vmatpush1.bf16.msra.mxu0 %v78
    %147 = vmatprep.subr.bf16.mxu0 %v75
    %148 = vmatpush1.bf16.msra.mxu0 %v74
    %149 = vmatprep.subr.bf16.mxu0 0
    %150 = vmatpush2.bf16.msra.mxu0 0
    %151 = vmatprep.subr.bf16.mxu0 0
    %152 = vmatpush2.bf16.msra.mxu0 0
    %153 = vmatprep.subr.bf16.mxu0 0
    %154 = vmatpush2.bf16.msra.mxu0 0
    %155 = vmatprep.subr.bf16.mxu0 0
    %156 = vmatpush2.bf16.msra.mxu0 0
    %157 = vmatprep.subr.bf16.mxu0 0
    %158 = vmatpush2.bf16.msra.mxu0 0
    %159 = vmatprep.subr.bf16.mxu0 0
    %160 = vmatpush2.bf16.msra.mxu0 0
    %161 = vmatprep.subr.bf16.mxu0 0
    %162 = vmatpush2.bf16.msra.mxu0 0
    %163 = vmatprep.subr.bf16.mxu0 0
    %164 = vmatpush2.bf16.msra.mxu0 0
    %165 = vmatprep.mubr.bf16.mxu0 0
    %166 = vmatmul.mubr.bf16.gmra.mxu0 %v90
    %v167 = vpop.f32.mrf.mxu0
    %v168 = vadd.f32 0.0, %v167
    %v169 = vpop.f32.mrf.mxu0
    %v170 = vadd.f32 0.0, %v169
    %v171 = vpop.f32.mrf.mxu0
    %v172 = vpop.f32.mrf.mxu0
    %173 = vdwg.mxu0
    %174 = vst [vmem:[#allocation7] sm:$0xff] %v127
    %175 = vst [vmem:[#allocation7 + $0x8] sm:$0xff] %v129
    %176 = vst [vmem:[#allocation7 + $0x10] sm:$0xff] %v168
    %177 = vst [vmem:[#allocation7 + $0x18] sm:$0xff] %v170
    // Predicated region
    $region18: #{tpu_custom_call.1} parent=1 // pred_check
      _
    $region19: #{tpu_custom_call.1} parent=1 // pred_check_branch
      %179 = sbr.rel (0) target = $region21
    $region20: #{tpu_custom_call.1} parent=1 // pred_region
      %s181 = ssub.s32 512, 512
      %182 = vsyncadd [#allocation4], %s181
      %s184 = sshll.u32 [#allocation7], 4
      %s185 = int_to_ptr.vmem [resolvable:$true] %s184
      %187 = dma.vmem_to_hbm [thread:$0]  %s185, 512, %s2, [#allocation4]
    $region21: #{tpu_custom_call.1} parent=1 // pred_fallthru
      _
    // Predicated region
    $region22: #{tpu_custom_call.1} parent=1 // pred_check
      _
    $region23: #{tpu_custom_call.1} parent=1 // pred_check_branch
      %189 = sbr.rel (0) target = $region25
    $region24: #{tpu_custom_call.1} parent=1 // pred_region
      %190 = dma.done [#allocation4], 512
    $region25: #{tpu_custom_call.1} parent=1 // pred_fallthru
      _
    %191 = vsyncpa [#allocation3], 1
    %192 = vsyncpa [#allocation6], 1
    %193 = vsyncpa [#allocation4], 1

</llo_original>
